<compile_context>
chip_gen: v7x
topology: tpu7x:2x2x1
jax: 0.10.0
libtpu: 0.0.40
codegen_flags: <defaults>
</compile_context>

<pallas_src>
import functools

import jax
import jax.numpy as jnp
from jax.experimental import pallas as pl
from jax.experimental.pallas import tpu as pltpu


def _round_up(a, m):
    return (a + m - 1) // m * m


def _cdiv(a, b):
    return (a + b - 1) // b


def _vmem_capacity_bytes():
    """Physical VMEM per TensorCore; conservative fallback if the query fails."""
    try:
        cap = getattr(pltpu.get_tpu_info(), "vmem_capacity_bytes", None)
        if cap:
            return int(cap)
    except Exception:
        pass
    return 64 << 20  # v7x-sized fallback: safe on every generation


def _trigkan_kernel(x_ref, w_ref, b_ref, o_ref, feats_ref, *,
                    degree, input_dim, mm_dtype):
    """Computes one (tb, tn) output tile.

    feats_ref: persistent (tb, 2*degree*input_dim) VMEM scratch in mm_dtype.
    It is (re)built only at output-grid step n == 0 and reused for all n steps
    of the current batch tile.
    """
    I = input_dim
    D = degree
    DI = D * I

    @pl.when(pl.program_id(1) == 0)
    def _build_features():
        x = x_ref[...]                       # (tb, I) f32
        s1 = jnp.sin(x)                      # EUP
        c1 = jnp.cos(x)

        def store(d, s, c):
            # Cast at the point of production; bounds live f32 vregs.
            feats_ref[:, (d - 1) * I:d * I] = s.astype(mm_dtype)
            feats_ref[:, DI + (d - 1) * I:DI + d * I] = c.astype(mm_dtype)

        store(1, s1, c1)
        if D >= 2:
            x2 = x + x
            s2 = jnp.sin(x2)                 # EUP slot otherwise idle here
            c2 = jnp.cos(x2)
            store(2, s2, c2)
            # Two interleaved angle-addition recurrences (step 2x) so the
            # serial VPU dependency chain is ~D/2 long instead of D:
            #   sin((d+2)x) = sin(dx)cos(2x) + cos(dx)sin(2x)
            #   cos((d+2)x) = cos(dx)cos(2x) - sin(dx)sin(2x)
            sa, ca = s1, c1                  # odd harmonics: d = 3, 5, ...
            sb, cb = s2, c2                  # even harmonics: d = 4, 6, ...
            for d in range(3, D + 1):
                if d % 2 == 1:
                    sa, ca = sa * c2 + ca * s2, ca * c2 - sa * s2
                    store(d, sa, ca)
                else:
                    sb, cb = sb * c2 + cb * s2, cb * c2 - sb * s2
                    store(d, sb, cb)
        # TODO(synk): for input_dim << 128 this phase runs at input_dim/128
        # lane utilization; repack x lane-dense if profiling shows it exposed
        # (for large tn it is hidden under the MXU).

    y = jnp.dot(feats_ref[...], w_ref[...], preferred_element_type=jnp.float32)
    # NOTE: bias kept as a tiny separate (1, tn) input; folding it into the
    # matmul via a ones-column was flagged as only a minor win.
    o_ref[...] = (y + b_ref[...]).astype(o_ref.dtype)


def trigkan_pack_params(trig_coeffs, *, mm_dtype=jnp.bfloat16):
    """One-time parameter packing (hoisted out of the per-call forward path).

    Returns:
      w    : (2*D*input_dim, O_pad) mm_dtype, rows ordered
             [sin d=1..D | cos d=1..D], each d-block i-minor,
             O_pad = round_up(output_dim, 128).
      bias : (1, O_pad) f32, bias[o] = sum_i C[i, o, 0, 1]  (the d=0 term).
    """
    c = jnp.asarray(trig_coeffs, jnp.float32)
    I, O, Dp1, _ = c.shape
    D = Dp1 - 1
    O_pad = _round_up(O, 128)

    bias = jnp.sum(c[:, :, 0, 1], axis=0)            # d=0: cos(0)=1, sin(0)=0
    bias = jnp.pad(bias, (0, O_pad - O)).reshape(1, O_pad)

    if D == 0:
        return jnp.zeros((0, O_pad), mm_dtype), bias

    # Row (d-1)*I + i       -> C[i, o, d, 0]  (sin)
    # Row D*I + (d-1)*I + i -> C[i, o, d, 1]  (cos)
    w_sin = jnp.transpose(c[:, :, 1:, 0], (2, 0, 1)).reshape(D * I, O)
    w_cos = jnp.transpose(c[:, :, 1:, 1], (2, 0, 1)).reshape(D * I, O)
    w = jnp.concatenate([w_sin, w_cos], axis=0)
    w = jnp.pad(w, ((0, 0), (0, O_pad - O))).astype(mm_dtype)
    return w, bias


@functools.partial(
    jax.jit, static_argnames=("input_dim", "output_dim", "degree", "mm_dtype"))
def trigkan_forward(x, w, bias, *, input_dim, output_dim, degree,
                    mm_dtype=jnp.bfloat16):
    """x: any shape, flattened to (-1, input_dim); w/bias from trigkan_pack_params."""
    I, O, D = input_dim, output_dim, degree
    x2 = x.reshape(-1, I).astype(jnp.float32)
    B = x2.shape[0]

    if D == 0:
        return jnp.broadcast_to(bias[:, :O], (B, O))

    O_pad = w.shape[1]                                 # multiple of 128
    feat_dim = 2 * D * I
    mm_bytes = jnp.dtype(mm_dtype).itemsize

    # ---------------- generation-aware tiling ----------------
    vmem_cap = _vmem_capacity_bytes()
    budget = int(vmem_cap * 0.45)                      # working-set budget

    # Batch tiles: balanced, <= 512 rows, multiple of 16 (bf16 sublane packing).
    B16 = _round_up(B, 16)
    num_b = _cdiv(B16, 512)
    if num_b < 2 and B16 >= 256:
        # Both v7x TensorCores get a >=128-row tile; on 1-TC chips (v5e/v6e)
        # the extra grid step costs only ~0.35 us.
        num_b = 2
    tb = _round_up(_cdiv(B16, num_b), 16)

    def working_set(tb_, tn_):
        return (2 * tb_ * I * 4                        # x double-buffer (f32)
                + 2 * feat_dim * tn_ * mm_bytes        # w double-buffer
                + 2 * tn_ * 4                          # bias double-buffer
                + 2 * tb_ * tn_ * 4                    # out double-buffer (f32)
                + tb_ * feat_dim * mm_bytes            # feats VMEM scratch
                + 8 * tb_ * I * 4)                     # live trig f32 temporaries

    # Output tiles: prefer tn = O_pad (weights DMA'd once per batch tile, the
    # feature cache trivially reused); split only when over budget.
    tn = O_pad
    while tn > 128 and working_set(tb, tn) > budget:
        tn = _round_up(tn // 2, 128)
    num_n = _cdiv(O_pad, tn)
    tn = _round_up(_cdiv(O_pad, num_n), 128)           # balanced; num_n*tn >= O_pad
    O_pad2 = num_n * tn

    # If still over budget (very large feat_dim), shrink the batch tile too.
    while tb > 64 and working_set(tb, tn) > budget:
        tb = _round_up(tb // 2, 16)
    B_pad = _round_up(B16, tb)
    # TODO(synk): for very large 2*D*input_dim a K-axis grid with an f32 VMEM
    # accumulator is required; not needed at these shapes.

    # ---------------- padding ----------------
    if B_pad != B:
        x2 = jnp.pad(x2, ((0, B_pad - B), (0, 0)))
    if O_pad2 != O_pad:
        w = jnp.pad(w, ((0, 0), (0, O_pad2 - O_pad)))
        bias = jnp.pad(bias, ((0, 0), (0, O_pad2 - O_pad)))

    grid = (B_pad // tb, num_n)
    kernel = functools.partial(
        _trigkan_kernel, degree=D, input_dim=I, mm_dtype=mm_dtype)

    out = pl.pallas_call(
        kernel,
        out_shape=jax.ShapeDtypeStruct((B_pad, O_pad2), jnp.float32),
        grid_spec=pltpu.PrefetchScalarGridSpec(
            num_scalar_prefetch=0,
            grid=grid,
            in_specs=[
                pl.BlockSpec((tb, I), lambda b, n: (b, 0)),
                pl.BlockSpec((feat_dim, tn), lambda b, n: (0, n)),
                pl.BlockSpec((1, tn), lambda b, n: (0, n)),
            ],
            out_specs=pl.BlockSpec((tb, tn), lambda b, n: (b, n)),
            scratch_shapes=[pltpu.VMEM((tb, feat_dim), mm_dtype)],
        ),
        compiler_params=pltpu.CompilerParams(
            # The n axis must stay un-sharded ("arbitrary") so the per-core
            # feature cache built at n == 0 is valid for all n of the same
            # batch tile.
            dimension_semantics=("parallel", "arbitrary"),
            vmem_limit_bytes=int(vmem_cap * 0.7),
        ),
    )(x2, w, bias)
    return out[:B, :O]


def trigkan_reference(x, trig_coeffs, *, input_dim, degree):
    """Pure-JAX reference mirroring the PyTorch forward exactly."""
    x2 = x.reshape(-1, input_dim, 1).astype(jnp.float32)
    ar = jnp.arange(0, degree + 1, dtype=jnp.float32)
    xd = x2 * ar                                                 # (B, I, D+1)
    x_trig = jnp.stack((jnp.sin(xd), jnp.cos(xd)), axis=-1)      # (B, I, D+1, 2)
    return jnp.einsum('bidk,iodk->bo', x_trig, trig_coeffs.astype(jnp.float32))


if __name__ == "__main__":
    input_dim, output_dim, degree = 16, 32, 3

    key = jax.random.PRNGKey(0)
    k_x, k_c = jax.random.split(key)

    # Deterministic parameter init: normal(0, 1/(input_dim*(degree+1)))
    std = 1.0 / (input_dim * (degree + 1))
    trig_coeffs = std * jax.random.normal(
        k_c, (input_dim, output_dim, degree + 1, 2), dtype=jnp.float32)

    # Example input: leading dims get flattened by view(-1, input_dim)
    x = jax.random.normal(k_x, (2, 8, input_dim), dtype=jnp.float32)

    # One-time parameter packing (hoisted out of the per-call forward path).
    w, bias = trigkan_pack_params(trig_coeffs)

    y = trigkan_forward(x, w, bias, input_dim=input_dim,
                        output_dim=output_dim, degree=degree)
    y = jax.block_until_ready(y)

    y_ref = trigkan_reference(x, trig_coeffs, input_dim=input_dim, degree=degree)
    assert y.shape == (16, output_dim)
    # bf16 matmul inputs (f32 accumulate): tolerance relaxed accordingly.
    assert jnp.allclose(y, y_ref, atol=3e-3, rtol=2e-2), "mismatch vs reference"

    print("KERNEL_OK")
</pallas_src>

<mosaic_0001>
module attributes {stable_mosaic.version = 11 : i64} {
  func.func @_trigkan_kernel(%arg0: i32, %arg1: i32, %arg2: memref<16x16xf32, #tpu.memory_space<vmem>>, %arg3: memref<96x128xbf16, #tpu.memory_space<vmem>>, %arg4: memref<1x128xf32, #tpu.memory_space<vmem>>, %arg5: memref<16x128xf32, #tpu.memory_space<vmem>>, %arg6: memref<16x96xbf16, #tpu.memory_space<vmem>>) attributes {dimension_semantics = [#tpu.dimension_semantics<parallel>, #tpu.dimension_semantics<arbitrary>], iteration_bounds = array<i64: 1, 1>, scalar_prefetch = 0 : i64, scratch_operands = 1 : i64, tpu.core_type = #tpu.core_type<tc>, window_params = [{transform_indices = @transform_0, window_bounds = array<i64: 16, 16>}, {transform_indices = @transform_1, window_bounds = array<i64: 96, 128>}, {transform_indices = @transform_2, window_bounds = array<i64: 1, 128>}, {transform_indices = @transform_3, window_bounds = array<i64: 16, 128>}]} {
    %c0_i32 = arith.constant 0 : i32
    %0 = arith.cmpi eq, %arg1, %c0_i32 : i32
    %1 = arith.extui %0 : i1 to i32
    %c0_i32_0 = arith.constant 0 : i32
    %2 = arith.cmpi ne, %1, %c0_i32_0 : i32
    scf.if %2 {
      %c0_8 = arith.constant 0 : index
      %c0_9 = arith.constant 0 : index
      %10 = vector.load %arg2[%c0_8, %c0_9] : memref<16x16xf32, #tpu.memory_space<vmem>>, vector<16x16xf32>
      %11 = math.sin %10 : vector<16x16xf32>
      %12 = math.cos %10 : vector<16x16xf32>
      %13 = arith.truncf %11 : vector<16x16xf32> to vector<16x16xbf16>
      %c0_10 = arith.constant 0 : index
      %c0_11 = arith.constant 0 : index
      %14 = vector.load %arg6[%c0_10, %c0_11] : memref<16x96xbf16, #tpu.memory_space<vmem>>, vector<16x16xbf16>
      tpu.vector_store %arg6[%c0_10, %c0_11], %13 {strides = array<i32>} : memref<16x96xbf16, #tpu.memory_space<vmem>>, vector<16x16xbf16>,
      %15 = arith.truncf %12 : vector<16x16xf32> to vector<16x16xbf16>
      %c0_12 = arith.constant 0 : index
      %c48 = arith.constant 48 : index
      %16 = vector.load %arg6[%c0_12, %c48] : memref<16x96xbf16, #tpu.memory_space<vmem>>, vector<16x16xbf16>
      tpu.vector_store %arg6[%c0_12, %c48], %15 {strides = array<i32>} : memref<16x96xbf16, #tpu.memory_space<vmem>>, vector<16x16xbf16>,
      %17 = arith.addf %10, %10 : vector<16x16xf32>
      %18 = math.sin %17 : vector<16x16xf32>
      %19 = math.cos %17 : vector<16x16xf32>
      %20 = arith.truncf %18 : vector<16x16xf32> to vector<16x16xbf16>
      %c0_13 = arith.constant 0 : index
      %c16 = arith.constant 16 : index
      %21 = vector.load %arg6[%c0_13, %c16] : memref<16x96xbf16, #tpu.memory_space<vmem>>, vector<16x16xbf16>
      tpu.vector_store %arg6[%c0_13, %c16], %20 {strides = array<i32>} : memref<16x96xbf16, #tpu.memory_space<vmem>>, vector<16x16xbf16>,
      %22 = arith.truncf %19 : vector<16x16xf32> to vector<16x16xbf16>
      %c0_14 = arith.constant 0 : index
      %c64 = arith.constant 64 : index
      %23 = vector.load %arg6[%c0_14, %c64] : memref<16x96xbf16, #tpu.memory_space<vmem>>, vector<16x16xbf16>
      tpu.vector_store %arg6[%c0_14, %c64], %22 {strides = array<i32>} : memref<16x96xbf16, #tpu.memory_space<vmem>>, vector<16x16xbf16>,
      %24 = arith.mulf %11, %19 : vector<16x16xf32>
      %25 = arith.mulf %12, %18 : vector<16x16xf32>
      %26 = arith.addf %24, %25 : vector<16x16xf32>
      %27 = arith.mulf %12, %19 : vector<16x16xf32>
      %28 = arith.mulf %11, %18 : vector<16x16xf32>
      %29 = arith.subf %27, %28 : vector<16x16xf32>
      %30 = arith.truncf %26 : vector<16x16xf32> to vector<16x16xbf16>
      %c0_15 = arith.constant 0 : index
      %c32 = arith.constant 32 : index
      %31 = vector.load %arg6[%c0_15, %c32] : memref<16x96xbf16, #tpu.memory_space<vmem>>, vector<16x16xbf16>
      tpu.vector_store %arg6[%c0_15, %c32], %30 {strides = array<i32>} : memref<16x96xbf16, #tpu.memory_space<vmem>>, vector<16x16xbf16>,
      %32 = arith.truncf %29 : vector<16x16xf32> to vector<16x16xbf16>
      %c0_16 = arith.constant 0 : index
      %c80 = arith.constant 80 : index
      %33 = vector.load %arg6[%c0_16, %c80] : memref<16x96xbf16, #tpu.memory_space<vmem>>, vector<16x16xbf16>
      tpu.vector_store %arg6[%c0_16, %c80], %32 {strides = array<i32>} : memref<16x96xbf16, #tpu.memory_space<vmem>>, vector<16x16xbf16>,
    } else {
    }
    %c0 = arith.constant 0 : index
    %c0_1 = arith.constant 0 : index
    %3 = vector.load %arg6[%c0, %c0_1] : memref<16x96xbf16, #tpu.memory_space<vmem>>, vector<16x96xbf16>
    %c0_2 = arith.constant 0 : index
    %c0_3 = arith.constant 0 : index
    %4 = vector.load %arg3[%c0_2, %c0_3] : memref<96x128xbf16, #tpu.memory_space<vmem>>, vector<96x128xbf16>
    %cst = arith.constant dense<0.000000e+00> : vector<16x128xf32>
    %5 = tpu.matmul %3, %4, %cst {dimension_numbers = #tpu.dot_dimension_numbers<[1], [0], [0], [1], [0, 0, 1, 1], [], []>} : vector<16x96xbf16>, vector<96x128xbf16>, vector<16x128xf32> -> vector<16x128xf32>
    %c0_4 = arith.constant 0 : index
    %c0_5 = arith.constant 0 : index
    %6 = vector.load %arg4[%c0_4, %c0_5] : memref<1x128xf32, #tpu.memory_space<vmem>>, vector<1x128xf32>
    %7 = vector.broadcast %6 : vector<1x128xf32> to vector<16x128xf32>
    %8 = arith.addf %5, %7 : vector<16x128xf32>
    %c0_6 = arith.constant 0 : index
    %c0_7 = arith.constant 0 : index
    %9 = vector.load %arg5[%c0_6, %c0_7] : memref<16x128xf32, #tpu.memory_space<vmem>>, vector<16x128xf32>
    tpu.vector_store %arg5[%c0_6, %c0_7], %8 {strides = array<i32>} : memref<16x128xf32, #tpu.memory_space<vmem>>, vector<16x128xf32>,
    return
  }
  func.func @transform_0(%arg0: i32, %arg1: i32) -> (i32, i32) {
    %c0_i32 = arith.constant 0 : i32
    %c0_i32_0 = arith.constant 0 : i32
    return %arg0, %c0_i32 : i32, i32
  }
  func.func @transform_1(%arg0: i32, %arg1: i32) -> (i32, i32) {
    %c0_i32 = arith.constant 0 : i32
    %c0_i32_0 = arith.constant 0 : i32
    return %c0_i32, %arg1 : i32, i32
  }
  func.func @transform_2(%arg0: i32, %arg1: i32) -> (i32, i32) {
    %c0_i32 = arith.constant 0 : i32
    %c0_i32_0 = arith.constant 0 : i32
    return %c0_i32, %arg1 : i32, i32
  }
  func.func @transform_3(%arg0: i32, %arg1: i32) -> (i32, i32) {
    %c0_i32 = arith.constant 0 : i32
    return %arg0, %arg1 : i32, i32
  }
}

</mosaic_0001>

<llo_original>
// kernel: trigkan_forward.1
$region0: #{trigkan_forward.1}
  #allocation0 [shape = 'u32[]', space=smem, size = 0x4, offset = 0x4, fixed_abs, tag = 'smem constant byte address 0x4 - core index']
  #allocation1 [shape = 'u32[144,128]{1,0:T(1,128)}', space=vmem, size = 0x12000, scoped, tag = 'internal scratch']
  #allocation2 [shape = 'bf16[16,96]{1,0:T(16,128)(2,1)}', space=vmem, size = 0x1000, scoped, tag = 'scratch operand']
  %s0 = inlined_call_operand.hbm [shape: f32[16,16], index: 0, kind: input, shape index: {}]
  %s1 = inlined_call_operand.hbm [shape: bf16[96,128], index: 1, kind: input, shape index: {}]
  %s2 = inlined_call_operand.vmem [shape: f32[1,128], index: 2, kind: input, shape index: {}]
  %s3 = inlined_call_operand.hbm [shape: f32[16,128], index: 3, kind: output, shape index: {}]
  %s4 = sld [smem:[#allocation0]]
  $region34: #{trigkan_forward.1} parent=0
    _
  %s6 = ssub.s32 1, %s4
  %s7 = scalar_select 0, %s6, %s4
  $region1: #{trigkan_forward.1} parent=0
    #allocation3 [shape = 'u8[8192]{0}', space=vmem, size = 0x2000, scoped, tag = 'input window, operand 0, single buffered']
    #allocation4 [shape = 's32[1]{0}', space=sflag, size = 0x4, scoped, tag = 'scoped memory for trigkan_forward.1']
    #allocation5 [shape = 's32[1]{0}', space=sflag, size = 0x4, scoped, tag = 'scoped memory for trigkan_forward.1']
    #allocation6 [shape = 'u8[24576]{0}', space=vmem, size = 0x6000, scoped, tag = 'input window, operand 1, single buffered']
    #allocation7 [shape = 's32[1]{0}', space=sflag, size = 0x4, scoped, tag = 'scoped memory for trigkan_forward.1']
    #allocation8 [shape = 'u8[8192]{0}', space=vmem, size = 0x2000, scoped, tag = 'output window, operand 0, single buffered']
    %8 = vsyncpa [#allocation4], 0
    %9 = vsyncpa [#allocation7], 0
    %10 = vsyncpa [#allocation5], 0
    // Predicated region
    $region2: #{trigkan_forward.1} parent=1 // pred_check
      _
    $region3: #{trigkan_forward.1} parent=1 // pred_check_branch
      %12 = sbr.rel (0) target = $region5
    $region4: #{trigkan_forward.1} parent=1 // pred_region
      %s14 = ssub.s32 256, 256
      %15 = vsyncadd [#allocation4], %s14
      %s16 = sshll.u32 [#allocation3], 4
      %s17 = int_to_ptr.vmem [resolvable:$true] %s16
      %22 = dma.hbm_to_vmem [thread:$0]  %s0, 256, %s17, [#allocation4], 128, 128, 8
    $region5: #{trigkan_forward.1} parent=1 // pred_fallthru
      _
    // Predicated region
    $region6: #{trigkan_forward.1} parent=1 // pred_check
      _
    $region7: #{trigkan_forward.1} parent=1 // pred_check_branch
      %24 = sbr.rel (0) target = $region9
    $region8: #{trigkan_forward.1} parent=1 // pred_region
      %s26 = ssub.s32 768, 768
      %27 = vsyncadd [#allocation7], %s26
      %s28 = sshll.u32 [#allocation6], 4
      %s29 = int_to_ptr.vmem [resolvable:$true] %s28
      %34 = dma.hbm_to_vmem [thread:$0]  %s1, 768, %s29, [#allocation7], 64, 64, 4
    $region9: #{trigkan_forward.1} parent=1 // pred_fallthru
      _
    // Predicated region
    $region10: #{trigkan_forward.1} parent=1 // pred_check
      _
    $region11: #{trigkan_forward.1} parent=1 // pred_check_branch
      %36 = sbr.rel (0) target = $region13
    $region12: #{trigkan_forward.1} parent=1 // pred_region
      _
    $region13: #{trigkan_forward.1} parent=1 // pred_fallthru
      _
    // Predicated region
    $region14: #{trigkan_forward.1} parent=1 // pred_check
      _
    $region15: #{trigkan_forward.1} parent=1 // pred_check_branch
      %38 = sbr.rel (0) target = $region17
    $region16: #{trigkan_forward.1} parent=1 // pred_region
      %39 = dma.done [#allocation4], 256
    $region17: #{trigkan_forward.1} parent=1 // pred_fallthru
      _
    // Predicated region
    $region18: #{trigkan_forward.1} parent=1 // pred_check
      _
    $region19: #{trigkan_forward.1} parent=1 // pred_check_branch
      %41 = sbr.rel (0) target = $region21
    $region20: #{trigkan_forward.1} parent=1 // pred_region
      %42 = dma.done [#allocation7], 768
    $region21: #{trigkan_forward.1} parent=1 // pred_fallthru
      _
    %p44 = scmp.eq.s32.totalorder 0, 0
    // Predicated region
    $region22: #{trigkan_forward.1} parent=1 // pred_check
      %p45 = pneg %p44
    $region23: #{trigkan_forward.1} parent=1 // pred_check_branch
      %47 = sbr.rel (%p45) target = $region25
    $region24: #{trigkan_forward.1} parent=1 // pred_region
      %v48 = vld [vmem:[#allocation3] sm:$0xff]
      %v49 = vld [vmem:[#allocation3 + $0x8] sm:$0xff]
      %v50 = vand.u32 2147483647, %v48
      %vm51 = vcmp.le.f32.partialorder %v50, 0.7853982
      %vm52 = vcmp.lt.s32.totalorder %v48, 0
      %v53 = vand.u32 %v48, 2139095040
      %v54 = vshrl.u32 %v53, 23
      %v55 = vsub.s32 %v54, 127
      %v56 = vand.u32 2147483647, %v48
      %v57 = vand.u32 %v56, 8388607
      %v58 = vor.u32 %v57, 8388608
      %v59 = vsub.s32 0, %v58
      %v60 = vadd.s32 %v55, 1
      %vm61 = vcmp.gt.s32.totalorder %v60, 0
      %v62 = vsel %vm61, %v60, 0
      %v63 = vshrl.u32 %v62, 5
      %v64 = vand.u32 %v62, 31
      %v65 = vsub.s32 32, %v64
      %v66 = vshrl.u32 683565275, %v65
      %v67 = vshll.u32 683565275, %v64
      %v68 = vshrl.u32 2475754826, %v65
      %v69 = vor.u32 %v67, %v68
      %v70 = vshll.u32 2475754826, %v64
      %v71 = vshrl.u32 2131351028, %v65
      %v72 = vor.u32 %v70, %v71
      %v73 = vshll.u32 2131351028, %v64
      %v74 = vshrl.u32 2102212464, %v65
      %v75 = vor.u32 %v73, %v74
      %v76 = vshll.u32 2102212464, %v64
      %v77 = vshrl.u32 920167782, %v65
      %v78 = vor.u32 %v76, %v77
      %v79 = vshll.u32 920167782, %v64
      %v80 = vshrl.u32 1326507024, %v65
      %v81 = vor.u32 %v79, %v80
      %vm82 = vcmp.lt.s32.totalorder %v63, 1
      %vm83 = vcmp.lt.s32.totalorder %v63, 2
      %vm84 = vcmp.lt.s32.totalorder %v63, 3
      %vm85 = vcmp.lt.s32.totalorder %v63, 4
      %v86 = vsel %vm82, %v66, %v69
      %v87 = vsel %vm85, %v75, 2102212464
      %v88 = vsel %vm84, %v72, %v87
      %v89 = vsel %vm83, %v86, %v88
      %v90 = vsel %vm82, %v69, %v72
      %v91 = vsel %vm85, %v78, 920167782
      %v92 = vsel %vm84, %v75, %v91
      %v93 = vsel %vm83, %v90, %v92
      %v94 = vsel %vm82, %v72, %v75
      %v95 = vsel %vm85, %v81, 1326507024
      %v96 = vsel %vm84, %v78, %v95
      %v97 = vsel %vm83, %v94, %v96
      %v98 = vshll.u32 %v58, 8
      %v99 = vmul.u32.u64.compose %v98, %v97
      %v100 = vextract.low.u32 %v99
      %v101 = vextract.high.u32 %v99
      %v102 = vmul.u32.u64.compose %v98, %v93
      %v103 = vextract.low.u32 %v102
      %v104 = vextract.high.u32 %v102
      %v105 = vmul.u32 %v98, %v89
      %v106 = vadd.s32 %v101, %v103
      %vm107 = vc.u32 %v101, %v103
      %v108 = vadd.s32 %v104, 1
      %v109 = vsel %vm107, %v108, %v104
      %v110 = vadd.s32 %v105, %v109
      %v111 = vadd.s32 %v110, 536870912
      %v112 = vshrl.u32 %v111, 30
      %v113 = vshll.u32 %v112, 30
      %v114 = vsub.s32 %v110, %v113
      %vm115 = vcmp.lt.s32.totalorder %v114, 0
      %v116 = vsub.s32 0, %v114
      %v117 = vsel %vm115, %v116, %v114
      %v118 = vclz %v117
      %v119 = vsub.s32 %v118, 2
      %vm120 = vcmp.gt.s32.totalorder 0, %v119
      %v121 = vsel %vm120, 0, %v119
      %v122 = vsub.s32 32, %v121
      %v123 = vshll.u32 %v114, %v121
      %v124 = vshrl.u32 %v106, %v122
      %v125 = vor.u32 %v123, %v124
      %v126 = vsub.s32 4294967266, %v121
      %v127 = vadd.s32 %v126, 127
      %v128 = vshll.u32 %v127, 23
      %v129 = vor.u32 4788187, %v128
      %v130 = vand.u32 2147483647, %v129
      %v132 = vcvt.s32.f32 %v125
      %v133 = vmul.f32 %v132, %v130
      %v134 = vxor.u32 %v133, 2147483648
      %v135 = vsel %vm52, %v134, %v133
      %v136 = vsub.s32 4, %v112
      %v137 = vsel %vm52, %v136, %v112
      %v138 = vsel %vm51, %v48, %v135
      %v139 = vsel %vm51, 0, %v137
      %v140 = vcosq.f32.pop %v138
      %v141 = vsinq.f32.pop %v138
      %vm142 = vweird.f32 %v48
      %v143 = vadd.s32 %v139, 3
      %v144 = vand.u32 %v143, 3
      %vm145 = vcmp.lt.s32.totalorder %v144, 2
      %vm146 = vcmp.eq.s32.totalorder %v144, 0
      %v147 = vxor.u32 %v141, 2147483648
      %v148 = vsel %vm146, %v140, %v147
      %vm149 = vcmp.eq.s32.totalorder %v144, 2
      %v150 = vxor.u32 %v140, 2147483648
      %v151 = vsel %vm149, %v150, %v141
      %v152 = vsel %vm145, %v148, %v151
      %v153 = vsel %vm142, nan, %v152
      %v154 = vand.u32 2147483647, %v49
      %vm155 = vcmp.le.f32.partialorder %v154, 0.7853982
      %vm156 = vcmp.lt.s32.totalorder %v49, 0
      %v157 = vand.u32 %v49, 2139095040
      %v158 = vshrl.u32 %v157, 23
      %v159 = vsub.s32 %v158, 127
      %v160 = vand.u32 2147483647, %v49
      %v161 = vand.u32 %v160, 8388607
      %v162 = vor.u32 %v161, 8388608
      %v163 = vsub.s32 0, %v162
      %v164 = vadd.s32 %v159, 1
      %vm165 = vcmp.gt.s32.totalorder %v164, 0
      %v166 = vsel %vm165, %v164, 0
      %v167 = vshrl.u32 %v166, 5
      %v168 = vand.u32 %v166, 31
      %v169 = vsub.s32 32, %v168
      %v170 = vshrl.u32 683565275, %v169
      %v171 = vshll.u32 683565275, %v168
      %v172 = vshrl.u32 2475754826, %v169
      %v173 = vor.u32 %v171, %v172
      %v174 = vshll.u32 2475754826, %v168
      %v175 = vshrl.u32 2131351028, %v169
      %v176 = vor.u32 %v174, %v175
      %v177 = vshll.u32 2131351028, %v168
      %v178 = vshrl.u32 2102212464, %v169
      %v179 = vor.u32 %v177, %v178
      %v180 = vshll.u32 2102212464, %v168
      %v181 = vshrl.u32 920167782, %v169
      %v182 = vor.u32 %v180, %v181
      %v183 = vshll.u32 920167782, %v168
      %v184 = vshrl.u32 1326507024, %v169
      %v185 = vor.u32 %v183, %v184
      %vm186 = vcmp.lt.s32.totalorder %v167, 1
      %vm187 = vcmp.lt.s32.totalorder %v167, 2
      %vm188 = vcmp.lt.s32.totalorder %v167, 3
      %vm189 = vcmp.lt.s32.totalorder %v167, 4
      %v190 = vsel %vm186, %v170, %v173
      %v191 = vsel %vm189, %v179, 2102212464
      %v192 = vsel %vm188, %v176, %v191
      %v193 = vsel %vm187, %v190, %v192
      %v194 = vsel %vm186, %v173, %v176
      %v195 = vsel %vm189, %v182, 920167782
      %v196 = vsel %vm188, %v179, %v195
      %v197 = vsel %vm187, %v194, %v196
      %v198 = vsel %vm186, %v176, %v179
      %v199 = vsel %vm189, %v185, 1326507024
      %v200 = vsel %vm188, %v182, %v199
      %v201 = vsel %vm187, %v198, %v200
      %v202 = vshll.u32 %v162, 8
      %v203 = vmul.u32.u64.compose %v202, %v201
      %v204 = vextract.low.u32 %v203
      %v205 = vextract.high.u32 %v203
      %v206 = vmul.u32.u64.compose %v202, %v197
      %v207 = vextract.low.u32 %v206
      %v208 = vextract.high.u32 %v206
      %v209 = vmul.u32 %v202, %v193
      %v210 = vadd.s32 %v205, %v207
      %vm211 = vc.u32 %v205, %v207
      %v212 = vadd.s32 %v208, 1
      %v213 = vsel %vm211, %v212, %v208
      %v214 = vadd.s32 %v209, %v213
      %v215 = vadd.s32 %v214, 536870912
      %v216 = vshrl.u32 %v215, 30
      %v217 = vshll.u32 %v216, 30
      %v218 = vsub.s32 %v214, %v217
      %vm219 = vcmp.lt.s32.totalorder %v218, 0
      %v220 = vsub.s32 0, %v218
      %v221 = vsel %vm219, %v220, %v218
      %v222 = vclz %v221
      %v223 = vsub.s32 %v222, 2
      %vm224 = vcmp.gt.s32.totalorder 0, %v223
      %v225 = vsel %vm224, 0, %v223
      %v226 = vsub.s32 32, %v225
      %v227 = vshll.u32 %v218, %v225
      %v228 = vshrl.u32 %v210, %v226
      %v229 = vor.u32 %v227, %v228
      %v230 = vsub.s32 4294967266, %v225
      %v231 = vadd.s32 %v230, 127
      %v232 = vshll.u32 %v231, 23
      %v233 = vor.u32 4788187, %v232
      %v234 = vand.u32 2147483647, %v233
      %v236 = vcvt.s32.f32 %v229
      %v237 = vmul.f32 %v236, %v234
      %v238 = vxor.u32 %v237, 2147483648
      %v239 = vsel %vm156, %v238, %v237
      %v240 = vsub.s32 4, %v216
      %v241 = vsel %vm156, %v240, %v216
      %v242 = vsel %vm155, %v49, %v239
      %v243 = vsel %vm155, 0, %v241
      %v244 = vcosq.f32.pop %v242
      %v245 = vsinq.f32.pop %v242
      %vm246 = vweird.f32 %v49
      %v247 = vadd.s32 %v243, 3
      %v248 = vand.u32 %v247, 3
      %vm249 = vcmp.lt.s32.totalorder %v248, 2
      %vm250 = vcmp.eq.s32.totalorder %v248, 0
      %v251 = vxor.u32 %v245, 2147483648
      %v252 = vsel %vm250, %v244, %v251
      %vm253 = vcmp.eq.s32.totalorder %v248, 2
      %v254 = vxor.u32 %v244, 2147483648
      %v255 = vsel %vm253, %v254, %v245
      %v256 = vsel %vm249, %v252, %v255
      %v257 = vsel %vm246, nan, %v256
      %v258 = vand.u32 2147483647, %v48
      %vm259 = vcmp.le.f32.partialorder %v258, 0.7853982
      %vm260 = vcmp.lt.s32.totalorder %v48, 0
      %v261 = vand.u32 %v48, 2139095040
      %v262 = vshrl.u32 %v261, 23
      %v263 = vsub.s32 %v262, 127
      %v264 = vand.u32 2147483647, %v48
      %v265 = vand.u32 %v264, 8388607
      %v266 = vor.u32 %v265, 8388608
      %v267 = vsub.s32 0, %v266
      %v268 = vadd.s32 %v263, 1
      %vm269 = vcmp.gt.s32.totalorder %v268, 0
      %v270 = vsel %vm269, %v268, 0
      %v271 = vshrl.u32 %v270, 5
      %v272 = vand.u32 %v270, 31
      %v273 = vsub.s32 32, %v272
      %v274 = vshrl.u32 683565275, %v273
      %v275 = vshll.u32 683565275, %v272
      %v276 = vshrl.u32 2475754826, %v273
      %v277 = vor.u32 %v275, %v276
      %v278 = vshll.u32 2475754826, %v272
      %v279 = vshrl.u32 2131351028, %v273
      %v280 = vor.u32 %v278, %v279
      %v281 = vshll.u32 2131351028, %v272
      %v282 = vshrl.u32 2102212464, %v273
      %v283 = vor.u32 %v281, %v282
      %v284 = vshll.u32 2102212464, %v272
      %v285 = vshrl.u32 920167782, %v273
      %v286 = vor.u32 %v284, %v285
      %v287 = vshll.u32 920167782, %v272
      %v288 = vshrl.u32 1326507024, %v273
      %v289 = vor.u32 %v287, %v288
      %vm290 = vcmp.lt.s32.totalorder %v271, 1
      %vm291 = vcmp.lt.s32.totalorder %v271, 2
      %vm292 = vcmp.lt.s32.totalorder %v271, 3
      %vm293 = vcmp.lt.s32.totalorder %v271, 4
      %v294 = vsel %vm290, %v274, %v277
      %v295 = vsel %vm293, %v283, 2102212464
      %v296 = vsel %vm292, %v280, %v295
      %v297 = vsel %vm291, %v294, %v296
      %v298 = vsel %vm290, %v277, %v280
      %v299 = vsel %vm293, %v286, 920167782
      %v300 = vsel %vm292, %v283, %v299
      %v301 = vsel %vm291, %v298, %v300
      %v302 = vsel %vm290, %v280, %v283
      %v303 = vsel %vm293, %v289, 1326507024
      %v304 = vsel %vm292, %v286, %v303
      %v305 = vsel %vm291, %v302, %v304
      %v306 = vshll.u32 %v266, 8
      %v307 = vmul.u32.u64.compose %v306, %v305
      %v308 = vextract.low.u32 %v307
      %v309 = vextract.high.u32 %v307
      %v310 = vmul.u32.u64.compose %v306, %v301
      %v311 = vextract.low.u32 %v310
      %v312 = vextract.high.u32 %v310
      %v313 = vmul.u32 %v306, %v297
      %v314 = vadd.s32 %v309, %v311
      %vm315 = vc.u32 %v309, %v311
      %v316 = vadd.s32 %v312, 1
      %v317 = vsel %vm315, %v316, %v312
      %v318 = vadd.s32 %v313, %v317
      %v319 = vadd.s32 %v318, 536870912
      %v320 = vshrl.u32 %v319, 30
      %v321 = vshll.u32 %v320, 30
      %v322 = vsub.s32 %v318, %v321
      %vm323 = vcmp.lt.s32.totalorder %v322, 0
      %v324 = vsub.s32 0, %v322
      %v325 = vsel %vm323, %v324, %v322
      %v326 = vclz %v325
      %v327 = vsub.s32 %v326, 2
      %vm328 = vcmp.gt.s32.totalorder 0, %v327
      %v329 = vsel %vm328, 0, %v327
      %v330 = vsub.s32 32, %v329
      %v331 = vshll.u32 %v322, %v329
      %v332 = vshrl.u32 %v314, %v330
      %v333 = vor.u32 %v331, %v332
      %v334 = vsub.s32 4294967266, %v329
      %v335 = vadd.s32 %v334, 127
      %v336 = vshll.u32 %v335, 23
      %v337 = vor.u32 4788187, %v336
      %v338 = vand.u32 2147483647, %v337
      %v340 = vcvt.s32.f32 %v333
      %v341 = vmul.f32 %v340, %v338
      %v342 = vxor.u32 %v341, 2147483648
      %v343 = vsel %vm260, %v342, %v341
      %v344 = vsub.s32 4, %v320
      %v345 = vsel %vm260, %v344, %v320
      %v346 = vsel %vm259, %v48, %v343
      %v347 = vsel %vm259, 0, %v345
      %v348 = vcosq.f32.pop %v346
      %v349 = vsinq.f32.pop %v346
      %vm350 = vweird.f32 %v48
      %v351 = vand.u32 %v347, 3
      %vm352 = vcmp.lt.s32.totalorder %v351, 2
      %vm353 = vcmp.eq.s32.totalorder %v351, 0
      %v354 = vxor.u32 %v349, 2147483648
      %v355 = vsel %vm353, %v348, %v354
      %vm356 = vcmp.eq.s32.totalorder %v351, 2
      %v357 = vxor.u32 %v348, 2147483648
      %v358 = vsel %vm356, %v357, %v349
      %v359 = vsel %vm352, %v355, %v358
      %v360 = vsel %vm350, nan, %v359
      %v361 = vand.u32 2147483647, %v49
      %vm362 = vcmp.le.f32.partialorder %v361, 0.7853982
      %vm363 = vcmp.lt.s32.totalorder %v49, 0
      %v364 = vand.u32 %v49, 2139095040
      %v365 = vshrl.u32 %v364, 23
      %v366 = vsub.s32 %v365, 127
      %v367 = vand.u32 2147483647, %v49
      %v368 = vand.u32 %v367, 8388607
      %v369 = vor.u32 %v368, 8388608
      %v370 = vsub.s32 0, %v369
      %v371 = vadd.s32 %v366, 1
      %vm372 = vcmp.gt.s32.totalorder %v371, 0
      %v373 = vsel %vm372, %v371, 0
      %v374 = vshrl.u32 %v373, 5
      %v375 = vand.u32 %v373, 31
      %v376 = vsub.s32 32, %v375
      %v377 = vshrl.u32 683565275, %v376
      %v378 = vshll.u32 683565275, %v375
      %v379 = vshrl.u32 2475754826, %v376
      %v380 = vor.u32 %v378, %v379
      %v381 = vshll.u32 2475754826, %v375
      %v382 = vshrl.u32 2131351028, %v376
      %v383 = vor.u32 %v381, %v382
      %v384 = vshll.u32 2131351028, %v375
      %v385 = vshrl.u32 2102212464, %v376
      %v386 = vor.u32 %v384, %v385
      %v387 = vshll.u32 2102212464, %v375
      %v388 = vshrl.u32 920167782, %v376
      %v389 = vor.u32 %v387, %v388
      %v390 = vshll.u32 920167782, %v375
      %v391 = vshrl.u32 1326507024, %v376
      %v392 = vor.u32 %v390, %v391
      %vm393 = vcmp.lt.s32.totalorder %v374, 1
      %vm394 = vcmp.lt.s32.totalorder %v374, 2
      %vm395 = vcmp.lt.s32.totalorder %v374, 3
      %vm396 = vcmp.lt.s32.totalorder %v374, 4
      %v397 = vsel %vm393, %v377, %v380
      %v398 = vsel %vm396, %v386, 2102212464
      %v399 = vsel %vm395, %v383, %v398
      %v400 = vsel %vm394, %v397, %v399
      %v401 = vsel %vm393, %v380, %v383
      %v402 = vsel %vm396, %v389, 920167782
      %v403 = vsel %vm395, %v386, %v402
      %v404 = vsel %vm394, %v401, %v403
      %v405 = vsel %vm393, %v383, %v386
      %v406 = vsel %vm396, %v392, 1326507024
      %v407 = vsel %vm395, %v389, %v406
      %v408 = vsel %vm394, %v405, %v407
      %v409 = vshll.u32 %v369, 8
      %v410 = vmul.u32.u64.compose %v409, %v408
      %v411 = vextract.low.u32 %v410
      %v412 = vextract.high.u32 %v410
      %v413 = vmul.u32.u64.compose %v409, %v404
      %v414 = vextract.low.u32 %v413
      %v415 = vextract.high.u32 %v413
      %v416 = vmul.u32 %v409, %v400
      %v417 = vadd.s32 %v412, %v414
      %vm418 = vc.u32 %v412, %v414
      %v419 = vadd.s32 %v415, 1
      %v420 = vsel %vm418, %v419, %v415
      %v421 = vadd.s32 %v416, %v420
      %v422 = vadd.s32 %v421, 536870912
      %v423 = vshrl.u32 %v422, 30
      %v424 = vshll.u32 %v423, 30
      %v425 = vsub.s32 %v421, %v424
      %vm426 = vcmp.lt.s32.totalorder %v425, 0
      %v427 = vsub.s32 0, %v425
      %v428 = vsel %vm426, %v427, %v425
      %v429 = vclz %v428
      %v430 = vsub.s32 %v429, 2
      %vm431 = vcmp.gt.s32.totalorder 0, %v430
      %v432 = vsel %vm431, 0, %v430
      %v433 = vsub.s32 32, %v432
      %v434 = vshll.u32 %v425, %v432
      %v435 = vshrl.u32 %v417, %v433
      %v436 = vor.u32 %v434, %v435
      %v437 = vsub.s32 4294967266, %v432
      %v438 = vadd.s32 %v437, 127
      %v439 = vshll.u32 %v438, 23
      %v440 = vor.u32 4788187, %v439
      %v441 = vand.u32 2147483647, %v440
      %v443 = vcvt.s32.f32 %v436
      %v444 = vmul.f32 %v443, %v441
      %v445 = vxor.u32 %v444, 2147483648
      %v446 = vsel %vm363, %v445, %v444
      %v447 = vsub.s32 4, %v423
      %v448 = vsel %vm363, %v447, %v423
      %v449 = vsel %vm362, %v49, %v446
      %v450 = vsel %vm362, 0, %v448
      %v451 = vcosq.f32.pop %v449
      %v452 = vsinq.f32.pop %v449
      %vm453 = vweird.f32 %v49
      %v454 = vand.u32 %v450, 3
      %vm455 = vcmp.lt.s32.totalorder %v454, 2
      %vm456 = vcmp.eq.s32.totalorder %v454, 0
      %v457 = vxor.u32 %v452, 2147483648
      %v458 = vsel %vm456, %v451, %v457
      %vm459 = vcmp.eq.s32.totalorder %v454, 2
      %v460 = vxor.u32 %v451, 2147483648
      %v461 = vsel %vm459, %v460, %v452
      %v462 = vsel %vm455, %v458, %v461
      %v463 = vsel %vm453, nan, %v462
      %v464 = vpack.c.bf16 %v257, %v153
      %vm465 = vcmask 130048
      %466 = vst.msk [vmem:[#allocation2] sm:$0xff] %vm465, %v464
      %v467 = vpack.c.bf16 %v463, %v360
      %469 = vrot.lane.b32.xlu0 %v467, 48
      %v470 = vpop.permute.xlu0 %469
      %vm472 = vcmask 523648
      %473 = vst.msk [vmem:[#allocation2] sm:$0xff] %vm472, %v470
      %v474 = vadd.f32 %v48, %v48
      %v475 = vadd.f32 %v49, %v49
      %v476 = vand.u32 2147483647, %v474
      %vm477 = vcmp.le.f32.partialorder %v476, 0.7853982
      %vm478 = vcmp.lt.s32.totalorder %v474, 0
      %v479 = vand.u32 %v474, 2139095040
      %v480 = vshrl.u32 %v479, 23
      %v481 = vsub.s32 %v480, 127
      %v482 = vand.u32 2147483647, %v474
      %v483 = vand.u32 %v482, 8388607
      %v484 = vor.u32 %v483, 8388608
      %v485 = vsub.s32 0, %v484
      %v486 = vadd.s32 %v481, 1
      %vm487 = vcmp.gt.s32.totalorder %v486, 0
      %v488 = vsel %vm487, %v486, 0
      %v489 = vshrl.u32 %v488, 5
      %v490 = vand.u32 %v488, 31
      %v491 = vsub.s32 32, %v490
      %v492 = vshrl.u32 683565275, %v491
      %v493 = vshll.u32 683565275, %v490
      %v494 = vshrl.u32 2475754826, %v491
      %v495 = vor.u32 %v493, %v494
      %v496 = vshll.u32 2475754826, %v490
      %v497 = vshrl.u32 2131351028, %v491
      %v498 = vor.u32 %v496, %v497
      %v499 = vshll.u32 2131351028, %v490
      %v500 = vshrl.u32 2102212464, %v491
      %v501 = vor.u32 %v499, %v500
      %v502 = vshll.u32 2102212464, %v490
      %v503 = vshrl.u32 920167782, %v491
      %v504 = vor.u32 %v502, %v503
      %v505 = vshll.u32 920167782, %v490
      %v506 = vshrl.u32 1326507024, %v491
      %v507 = vor.u32 %v505, %v506
      %vm508 = vcmp.lt.s32.totalorder %v489, 1
      %vm509 = vcmp.lt.s32.totalorder %v489, 2
      %vm510 = vcmp.lt.s32.totalorder %v489, 3
      %vm511 = vcmp.lt.s32.totalorder %v489, 4
      %v512 = vsel %vm508, %v492, %v495
      %v513 = vsel %vm511, %v501, 2102212464
      %v514 = vsel %vm510, %v498, %v513
      %v515 = vsel %vm509, %v512, %v514
      %v516 = vsel %vm508, %v495, %v498
      %v517 = vsel %vm511, %v504, 920167782
      %v518 = vsel %vm510, %v501, %v517
      %v519 = vsel %vm509, %v516, %v518
      %v520 = vsel %vm508, %v498, %v501
      %v521 = vsel %vm511, %v507, 1326507024
      %v522 = vsel %vm510, %v504, %v521
      %v523 = vsel %vm509, %v520, %v522
      %v524 = vshll.u32 %v484, 8
      %v525 = vmul.u32.u64.compose %v524, %v523
      %v526 = vextract.low.u32 %v525
      %v527 = vextract.high.u32 %v525
      %v528 = vmul.u32.u64.compose %v524, %v519
      %v529 = vextract.low.u32 %v528
      %v530 = vextract.high.u32 %v528
      %v531 = vmul.u32 %v524, %v515
      %v532 = vadd.s32 %v527, %v529
      %vm533 = vc.u32 %v527, %v529
      %v534 = vadd.s32 %v530, 1
      %v535 = vsel %vm533, %v534, %v530
      %v536 = vadd.s32 %v531, %v535
      %v537 = vadd.s32 %v536, 536870912
      %v538 = vshrl.u32 %v537, 30
      %v539 = vshll.u32 %v538, 30
      %v540 = vsub.s32 %v536, %v539
      %vm541 = vcmp.lt.s32.totalorder %v540, 0
      %v542 = vsub.s32 0, %v540
      %v543 = vsel %vm541, %v542, %v540
      %v544 = vclz %v543
      %v545 = vsub.s32 %v544, 2
      %vm546 = vcmp.gt.s32.totalorder 0, %v545
      %v547 = vsel %vm546, 0, %v545
      %v548 = vsub.s32 32, %v547
      %v549 = vshll.u32 %v540, %v547
      %v550 = vshrl.u32 %v532, %v548
      %v551 = vor.u32 %v549, %v550
      %v552 = vsub.s32 4294967266, %v547
      %v553 = vadd.s32 %v552, 127
      %v554 = vshll.u32 %v553, 23
      %v555 = vor.u32 4788187, %v554
      %v556 = vand.u32 2147483647, %v555
      %v558 = vcvt.s32.f32 %v551
      %v559 = vmul.f32 %v558, %v556
      %v560 = vxor.u32 %v559, 2147483648
      %v561 = vsel %vm478, %v560, %v559
      %v562 = vsub.s32 4, %v538
      %v563 = vsel %vm478, %v562, %v538
      %v564 = vsel %vm477, %v474, %v561
      %v565 = vsel %vm477, 0, %v563
      %v566 = vcosq.f32.pop %v564
      %v567 = vsinq.f32.pop %v564
      %vm568 = vweird.f32 %v474
      %v569 = vadd.s32 %v565, 3
      %v570 = vand.u32 %v569, 3
      %vm571 = vcmp.lt.s32.totalorder %v570, 2
      %vm572 = vcmp.eq.s32.totalorder %v570, 0
      %v573 = vxor.u32 %v567, 2147483648
      %v574 = vsel %vm572, %v566, %v573
      %vm575 = vcmp.eq.s32.totalorder %v570, 2
      %v576 = vxor.u32 %v566, 2147483648
      %v577 = vsel %vm575, %v576, %v567
      %v578 = vsel %vm571, %v574, %v577
      %v579 = vsel %vm568, nan, %v578
      %v580 = vand.u32 2147483647, %v475
      %vm581 = vcmp.le.f32.partialorder %v580, 0.7853982
      %vm582 = vcmp.lt.s32.totalorder %v475, 0
      %v583 = vand.u32 %v475, 2139095040
      %v584 = vshrl.u32 %v583, 23
      %v585 = vsub.s32 %v584, 127
      %v586 = vand.u32 2147483647, %v475
      %v587 = vand.u32 %v586, 8388607
      %v588 = vor.u32 %v587, 8388608
      %v589 = vsub.s32 0, %v588
      %v590 = vadd.s32 %v585, 1
      %vm591 = vcmp.gt.s32.totalorder %v590, 0
      %v592 = vsel %vm591, %v590, 0
      %v593 = vshrl.u32 %v592, 5
      %v594 = vand.u32 %v592, 31
      %v595 = vsub.s32 32, %v594
      %v596 = vshrl.u32 683565275, %v595
      %v597 = vshll.u32 683565275, %v594
      %v598 = vshrl.u32 2475754826, %v595
      %v599 = vor.u32 %v597, %v598
      %v600 = vshll.u32 2475754826, %v594
      %v601 = vshrl.u32 2131351028, %v595
      %v602 = vor.u32 %v600, %v601
      %v603 = vshll.u32 2131351028, %v594
      %v604 = vshrl.u32 2102212464, %v595
      %v605 = vor.u32 %v603, %v604
      %v606 = vshll.u32 2102212464, %v594
      %v607 = vshrl.u32 920167782, %v595
      %v608 = vor.u32 %v606, %v607
      %v609 = vshll.u32 920167782, %v594
      %v610 = vshrl.u32 1326507024, %v595
      %v611 = vor.u32 %v609, %v610
      %vm612 = vcmp.lt.s32.totalorder %v593, 1
      %vm613 = vcmp.lt.s32.totalorder %v593, 2
      %vm614 = vcmp.lt.s32.totalorder %v593, 3
      %vm615 = vcmp.lt.s32.totalorder %v593, 4
      %v616 = vsel %vm612, %v596, %v599
      %v617 = vsel %vm615, %v605, 2102212464
      %v618 = vsel %vm614, %v602, %v617
      %v619 = vsel %vm613, %v616, %v618
      %v620 = vsel %vm612, %v599, %v602
      %v621 = vsel %vm615, %v608, 920167782
      %v622 = vsel %vm614, %v605, %v621
      %v623 = vsel %vm613, %v620, %v622
      %v624 = vsel %vm612, %v602, %v605
      %v625 = vsel %vm615, %v611, 1326507024
      %v626 = vsel %vm614, %v608, %v625
      %v627 = vsel %vm613, %v624, %v626
      %v628 = vshll.u32 %v588, 8
      %v629 = vmul.u32.u64.compose %v628, %v627
      %v630 = vextract.low.u32 %v629
      %v631 = vextract.high.u32 %v629
      %v632 = vmul.u32.u64.compose %v628, %v623
      %v633 = vextract.low.u32 %v632
      %v634 = vextract.high.u32 %v632
      %v635 = vmul.u32 %v628, %v619
      %v636 = vadd.s32 %v631, %v633
      %vm637 = vc.u32 %v631, %v633
      %v638 = vadd.s32 %v634, 1
      %v639 = vsel %vm637, %v638, %v634
      %v640 = vadd.s32 %v635, %v639
      %v641 = vadd.s32 %v640, 536870912
      %v642 = vshrl.u32 %v641, 30
      %v643 = vshll.u32 %v642, 30
      %v644 = vsub.s32 %v640, %v643
      %vm645 = vcmp.lt.s32.totalorder %v644, 0
      %v646 = vsub.s32 0, %v644
      %v647 = vsel %vm645, %v646, %v644
      %v648 = vclz %v647
      %v649 = vsub.s32 %v648, 2
      %vm650 = vcmp.gt.s32.totalorder 0, %v649
      %v651 = vsel %vm650, 0, %v649
      %v652 = vsub.s32 32, %v651
      %v653 = vshll.u32 %v644, %v651
      %v654 = vshrl.u32 %v636, %v652
      %v655 = vor.u32 %v653, %v654
      %v656 = vsub.s32 4294967266, %v651
      %v657 = vadd.s32 %v656, 127
      %v658 = vshll.u32 %v657, 23
      %v659 = vor.u32 4788187, %v658
      %v660 = vand.u32 2147483647, %v659
      %v662 = vcvt.s32.f32 %v655
      %v663 = vmul.f32 %v662, %v660
      %v664 = vxor.u32 %v663, 2147483648
      %v665 = vsel %vm582, %v664, %v663
      %v666 = vsub.s32 4, %v642
      %v667 = vsel %vm582, %v666, %v642
      %v668 = vsel %vm581, %v475, %v665
      %v669 = vsel %vm581, 0, %v667
      %v670 = vcosq.f32.pop %v668
      %v671 = vsinq.f32.pop %v668
      %vm672 = vweird.f32 %v475
      %v673 = vadd.s32 %v669, 3
      %v674 = vand.u32 %v673, 3
      %vm675 = vcmp.lt.s32.totalorder %v674, 2
      %vm676 = vcmp.eq.s32.totalorder %v674, 0
      %v677 = vxor.u32 %v671, 2147483648
      %v678 = vsel %vm676, %v670, %v677
      %vm679 = vcmp.eq.s32.totalorder %v674, 2
      %v680 = vxor.u32 %v670, 2147483648
      %v681 = vsel %vm679, %v680, %v671
      %v682 = vsel %vm675, %v678, %v681
      %v683 = vsel %vm672, nan, %v682
      %v684 = vand.u32 2147483647, %v474
      %vm685 = vcmp.le.f32.partialorder %v684, 0.7853982
      %vm686 = vcmp.lt.s32.totalorder %v474, 0
      %v687 = vand.u32 %v474, 2139095040
      %v688 = vshrl.u32 %v687, 23
      %v689 = vsub.s32 %v688, 127
      %v690 = vand.u32 2147483647, %v474
      %v691 = vand.u32 %v690, 8388607
      %v692 = vor.u32 %v691, 8388608
      %v693 = vsub.s32 0, %v692
      %v694 = vadd.s32 %v689, 1
      %vm695 = vcmp.gt.s32.totalorder %v694, 0
      %v696 = vsel %vm695, %v694, 0
      %v697 = vshrl.u32 %v696, 5
      %v698 = vand.u32 %v696, 31
      %v699 = vsub.s32 32, %v698
      %v700 = vshrl.u32 683565275, %v699
      %v701 = vshll.u32 683565275, %v698
      %v702 = vshrl.u32 2475754826, %v699
      %v703 = vor.u32 %v701, %v702
      %v704 = vshll.u32 2475754826, %v698
      %v705 = vshrl.u32 2131351028, %v699
      %v706 = vor.u32 %v704, %v705
      %v707 = vshll.u32 2131351028, %v698
      %v708 = vshrl.u32 2102212464, %v699
      %v709 = vor.u32 %v707, %v708
      %v710 = vshll.u32 2102212464, %v698
      %v711 = vshrl.u32 920167782, %v699
      %v712 = vor.u32 %v710, %v711
      %v713 = vshll.u32 920167782, %v698
      %v714 = vshrl.u32 1326507024, %v699
      %v715 = vor.u32 %v713, %v714
      %vm716 = vcmp.lt.s32.totalorder %v697, 1
      %vm717 = vcmp.lt.s32.totalorder %v697, 2
      %vm718 = vcmp.lt.s32.totalorder %v697, 3
      %vm719 = vcmp.lt.s32.totalorder %v697, 4
      %v720 = vsel %vm716, %v700, %v703
      %v721 = vsel %vm719, %v709, 2102212464
      %v722 = vsel %vm718, %v706, %v721
      %v723 = vsel %vm717, %v720, %v722
      %v724 = vsel %vm716, %v703, %v706
      %v725 = vsel %vm719, %v712, 920167782
      %v726 = vsel %vm718, %v709, %v725
      %v727 = vsel %vm717, %v724, %v726
      %v728 = vsel %vm716, %v706, %v709
      %v729 = vsel %vm719, %v715, 1326507024
      %v730 = vsel %vm718, %v712, %v729
      %v731 = vsel %vm717, %v728, %v730
      %v732 = vshll.u32 %v692, 8
      %v733 = vmul.u32.u64.compose %v732, %v731
      %v734 = vextract.low.u32 %v733
      %v735 = vextract.high.u32 %v733
      %v736 = vmul.u32.u64.compose %v732, %v727
      %v737 = vextract.low.u32 %v736
      %v738 = vextract.high.u32 %v736
      %v739 = vmul.u32 %v732, %v723
      %v740 = vadd.s32 %v735, %v737
      %vm741 = vc.u32 %v735, %v737
      %v742 = vadd.s32 %v738, 1
      %v743 = vsel %vm741, %v742, %v738
      %v744 = vadd.s32 %v739, %v743
      %v745 = vadd.s32 %v744, 536870912
      %v746 = vshrl.u32 %v745, 30
      %v747 = vshll.u32 %v746, 30
      %v748 = vsub.s32 %v744, %v747
      %vm749 = vcmp.lt.s32.totalorder %v748, 0
      %v750 = vsub.s32 0, %v748
      %v751 = vsel %vm749, %v750, %v748
      %v752 = vclz %v751
      %v753 = vsub.s32 %v752, 2
      %vm754 = vcmp.gt.s32.totalorder 0, %v753
      %v755 = vsel %vm754, 0, %v753
      %v756 = vsub.s32 32, %v755
      %v757 = vshll.u32 %v748, %v755
      %v758 = vshrl.u32 %v740, %v756
      %v759 = vor.u32 %v757, %v758
      %v760 = vsub.s32 4294967266, %v755
      %v761 = vadd.s32 %v760, 127
      %v762 = vshll.u32 %v761, 23
      %v763 = vor.u32 4788187, %v762
      %v764 = vand.u32 2147483647, %v763
      %v766 = vcvt.s32.f32 %v759
      %v767 = vmul.f32 %v766, %v764
      %v768 = vxor.u32 %v767, 2147483648
      %v769 = vsel %vm686, %v768, %v767
      %v770 = vsub.s32 4, %v746
      %v771 = vsel %vm686, %v770, %v746
      %v772 = vsel %vm685, %v474, %v769
      %v773 = vsel %vm685, 0, %v771
      %v774 = vcosq.f32.pop %v772
      %v775 = vsinq.f32.pop %v772
      %vm776 = vweird.f32 %v474
      %v777 = vand.u32 %v773, 3
      %vm778 = vcmp.lt.s32.totalorder %v777, 2
      %vm779 = vcmp.eq.s32.totalorder %v777, 0
      %v780 = vxor.u32 %v775, 2147483648
      %v781 = vsel %vm779, %v774, %v780
      %vm782 = vcmp.eq.s32.totalorder %v777, 2
      %v783 = vxor.u32 %v774, 2147483648
      %v784 = vsel %vm782, %v783, %v775
      %v785 = vsel %vm778, %v781, %v784
      %v786 = vsel %vm776, nan, %v785
      %v787 = vand.u32 2147483647, %v475
      %vm788 = vcmp.le.f32.partialorder %v787, 0.7853982
      %vm789 = vcmp.lt.s32.totalorder %v475, 0
      %v790 = vand.u32 %v475, 2139095040
      %v791 = vshrl.u32 %v790, 23
      %v792 = vsub.s32 %v791, 127
      %v793 = vand.u32 2147483647, %v475
      %v794 = vand.u32 %v793, 8388607
      %v795 = vor.u32 %v794, 8388608
      %v796 = vsub.s32 0, %v795
      %v797 = vadd.s32 %v792, 1
      %vm798 = vcmp.gt.s32.totalorder %v797, 0
      %v799 = vsel %vm798, %v797, 0
      %v800 = vshrl.u32 %v799, 5
      %v801 = vand.u32 %v799, 31
      %v802 = vsub.s32 32, %v801
      %v803 = vshrl.u32 683565275, %v802
      %v804 = vshll.u32 683565275, %v801
      %v805 = vshrl.u32 2475754826, %v802
      %v806 = vor.u32 %v804, %v805
      %v807 = vshll.u32 2475754826, %v801
      %v808 = vshrl.u32 2131351028, %v802
      %v809 = vor.u32 %v807, %v808
      %v810 = vshll.u32 2131351028, %v801
      %v811 = vshrl.u32 2102212464, %v802
      %v812 = vor.u32 %v810, %v811
      %v813 = vshll.u32 2102212464, %v801
      %v814 = vshrl.u32 920167782, %v802
      %v815 = vor.u32 %v813, %v814
      %v816 = vshll.u32 920167782, %v801
      %v817 = vshrl.u32 1326507024, %v802
      %v818 = vor.u32 %v816, %v817
      %vm819 = vcmp.lt.s32.totalorder %v800, 1
      %vm820 = vcmp.lt.s32.totalorder %v800, 2
      %vm821 = vcmp.lt.s32.totalorder %v800, 3
      %vm822 = vcmp.lt.s32.totalorder %v800, 4
      %v823 = vsel %vm819, %v803, %v806
      %v824 = vsel %vm822, %v812, 2102212464
      %v825 = vsel %vm821, %v809, %v824
      %v826 = vsel %vm820, %v823, %v825
      %v827 = vsel %vm819, %v806, %v809
      %v828 = vsel %vm822, %v815, 920167782
      %v829 = vsel %vm821, %v812, %v828
      %v830 = vsel %vm820, %v827, %v829
      %v831 = vsel %vm819, %v809, %v812
      %v832 = vsel %vm822, %v818, 1326507024
      %v833 = vsel %vm821, %v815, %v832
      %v834 = vsel %vm820, %v831, %v833
      %v835 = vshll.u32 %v795, 8
      %v836 = vmul.u32.u64.compose %v835, %v834
      %v837 = vextract.low.u32 %v836
      %v838 = vextract.high.u32 %v836
      %v839 = vmul.u32.u64.compose %v835, %v830
      %v840 = vextract.low.u32 %v839
      %v841 = vextract.high.u32 %v839
      %v842 = vmul.u32 %v835, %v826
      %v843 = vadd.s32 %v838, %v840
      %vm844 = vc.u32 %v838, %v840
      %v845 = vadd.s32 %v841, 1
      %v846 = vsel %vm844, %v845, %v841
      %v847 = vadd.s32 %v842, %v846
      %v848 = vadd.s32 %v847, 536870912
      %v849 = vshrl.u32 %v848, 30
      %v850 = vshll.u32 %v849, 30
      %v851 = vsub.s32 %v847, %v850
      %vm852 = vcmp.lt.s32.totalorder %v851, 0
      %v853 = vsub.s32 0, %v851
      %v854 = vsel %vm852, %v853, %v851
      %v855 = vclz %v854
      %v856 = vsub.s32 %v855, 2
      %vm857 = vcmp.gt.s32.totalorder 0, %v856
      %v858 = vsel %vm857, 0, %v856
      %v859 = vsub.s32 32, %v858
      %v860 = vshll.u32 %v851, %v858
      %v861 = vshrl.u32 %v843, %v859
      %v862 = vor.u32 %v860, %v861
      %v863 = vsub.s32 4294967266, %v858
      %v864 = vadd.s32 %v863, 127
      %v865 = vshll.u32 %v864, 23
      %v866 = vor.u32 4788187, %v865
      %v867 = vand.u32 2147483647, %v866
      %v869 = vcvt.s32.f32 %v862
      %v870 = vmul.f32 %v869, %v867
      %v871 = vxor.u32 %v870, 2147483648
      %v872 = vsel %vm789, %v871, %v870
      %v873 = vsub.s32 4, %v849
      %v874 = vsel %vm789, %v873, %v849
      %v875 = vsel %vm788, %v475, %v872
      %v876 = vsel %vm788, 0, %v874
      %v877 = vcosq.f32.pop %v875
      %v878 = vsinq.f32.pop %v875
      %vm879 = vweird.f32 %v475
      %v880 = vand.u32 %v876, 3
      %vm881 = vcmp.lt.s32.totalorder %v880, 2
      %vm882 = vcmp.eq.s32.totalorder %v880, 0
      %v883 = vxor.u32 %v878, 2147483648
      %v884 = vsel %vm882, %v877, %v883
      %vm885 = vcmp.eq.s32.totalorder %v880, 2
      %v886 = vxor.u32 %v877, 2147483648
      %v887 = vsel %vm885, %v886, %v878
      %v888 = vsel %vm881, %v884, %v887
      %v889 = vsel %vm879, nan, %v888
      %v890 = vpack.c.bf16 %v683, %v579
      %892 = vrot.lane.b32.xlu0 %v890, 16
      %v893 = vpop.permute.xlu0 %892
      %vm895 = vcmask 261248
      %896 = vst.msk [vmem:[#allocation2] sm:$0xff] %vm895, %v893
      %v897 = vpack.c.bf16 %v889, %v786
      %899 = vrot.lane.b32.xlu0 %v897, 64
      %v900 = vpop.permute.xlu0 %899
      %vm902 = vcmask 654848
      %903 = vst.msk [vmem:[#allocation2] sm:$0xff] %vm902, %v900
      %v904 = vmul.f32 %v153, %v786
      %v905 = vmul.f32 %v257, %v889
      %v906 = vmul.f32 %v360, %v579
      %v907 = vmul.f32 %v463, %v683
      %v908 = vadd.f32 %v904, %v906
      %v909 = vadd.f32 %v905, %v907
      %v910 = vmul.f32 %v360, %v786
      %v911 = vmul.f32 %v463, %v889
      %v912 = vmul.f32 %v153, %v579
      %v913 = vmul.f32 %v257, %v683
      %v914 = vsub.f32 %v910, %v912
      %v915 = vsub.f32 %v911, %v913
      %v916 = vpack.c.bf16 %v909, %v908
      %918 = vrot.lane.b32.xlu0 %v916, 32
      %v919 = vpop.permute.xlu0 %918
      %vm921 = vcmask 392448
      %922 = vst.msk [vmem:[#allocation2] sm:$0xff] %vm921, %v919
      %v923 = vpack.c.bf16 %v915, %v914
      %925 = vrot.lane.b32.xlu0 %v923, 80
      %v926 = vpop.permute.xlu0 %925
      %vm928 = vcmask 786048
      %929 = vst.msk [vmem:[#allocation2] sm:$0xff] %vm928, %v926
    $region25: #{trigkan_forward.1} parent=1 // pred_fallthru
      _
    %v930 = vld [vmem:[#allocation2] sm:$0xff]
    %v931 = vld [vmem:[#allocation6] sm:$0xf]
    %v932 = vld [vmem:[#allocation6 + $0x4] sm:$0xf]
    %v933 = vld [vmem:[#allocation6 + $0x8] sm:$0xf]
    %v934 = vld [vmem:[#allocation6 + $0xc] sm:$0xf]
    %v935 = vld [vmem:[#allocation6 + $0x10] sm:$0xf]
    %v936 = vld [vmem:[#allocation6 + $0x14] sm:$0xf]
    %v937 = vld [vmem:[#allocation6 + $0x18] sm:$0xf]
    %v938 = vld [vmem:[#allocation6 + $0x1c] sm:$0xf]
    %v939 = vld [vmem:[#allocation6 + $0x20] sm:$0xf]
    %v940 = vld [vmem:[#allocation6 + $0x24] sm:$0xf]
    %v941 = vld [vmem:[#allocation6 + $0x28] sm:$0xf]
    %v942 = vld [vmem:[#allocation6 + $0x2c] sm:$0xf]
    %v943 = vld [vmem:[%s2] sm:$0x1]
    %v945 = vlaneseq
    %v946 = vshrl.u32 %v945, 7
    %v947 = vsub.s32 0, %v946
    %v948 = vrot.slane %v943, %v947
    %v962 = vunpack.c.l.b16 %v931
    %v963 = vunpack.c.l.b16 %v932
    %v964 = vunpack.c.l.b16 %v933
    %v965 = vunpack.c.l.b16 %v934
    %v966 = vunpack.c.l.b16 %v935
    %v967 = vunpack.c.l.b16 %v936
    %v968 = vunpack.c.l.b16 %v937
    %v969 = vunpack.c.l.b16 %v938
    %v970 = vunpack.c.l.b16 %v939
    %v971 = vunpack.c.l.b16 %v940
    %v972 = vunpack.c.l.b16 %v941
    %v973 = vunpack.c.l.b16 %v942
    %v974 = vpack.c.b16 %v963, %v962
    %v975 = vpack.c.b16 %v965, %v964
    %v976 = vpack.c.b16 %v967, %v966
    %v977 = vpack.c.b16 %v969, %v968
    %v978 = vpack.c.b16 %v971, %v970
    %v979 = vpack.c.b16 %v973, %v972
    %vm986 = vcmask 785408
    %v988 = vsel %vm986, %v930, 0
    %990 = vmatprep.subr.bf16.mxu0 0
    %991 = vmatpush1.bf16.msra.mxu0 %v974
    %992 = vmatprep.subr.bf16.mxu0 0
    %993 = vmatpush1.bf16.msra.mxu0 %v975
    %994 = vmatprep.subr.bf16.mxu0 0
    %995 = vmatpush1.bf16.msra.mxu0 %v976
    %996 = vmatprep.subr.bf16.mxu0 0
    %997 = vmatpush1.bf16.msra.mxu0 %v977
    %998 = vmatprep.subr.bf16.mxu0 0
    %999 = vmatpush1.bf16.msra.mxu0 %v978
    %1000 = vmatprep.subr.bf16.mxu0 0
    %1001 = vmatpush1.bf16.msra.mxu0 %v979
    %1002 = vmatprep.subr.bf16.mxu0 0
    %1003 = vmatpush1.bf16.msra.mxu0 0
    %1004 = vmatprep.subr.bf16.mxu0 0
    %1005 = vmatpush1.bf16.msra.mxu0 0
    %1006 = vmatprep.subr.bf16.mxu0 0
    %1007 = vmatpush1.bf16.msra.mxu0 0
    %1008 = vmatprep.subr.bf16.mxu0 0
    %1009 = vmatpush1.bf16.msra.mxu0 0
    %1010 = vmatprep.subr.bf16.mxu0 0
    %1011 = vmatpush1.bf16.msra.mxu0 0
    %1012 = vmatprep.subr.bf16.mxu0 0
    %1013 = vmatpush1.bf16.msra.mxu0 0
    %1014 = vmatprep.subr.bf16.mxu0 0
    %1015 = vmatpush1.bf16.msra.mxu0 0
    %1016 = vmatprep.subr.bf16.mxu0 0
    %1017 = vmatpush1.bf16.msra.mxu0 0
    %1018 = vmatprep.subr.bf16.mxu0 0
    %1019 = vmatpush1.bf16.msra.mxu0 0
    %1020 = vmatprep.subr.bf16.mxu0 0
    %1021 = vmatpush1.bf16.msra.mxu0 0
    %1022 = vmatprep.mubr.bf16.mxu0 0
    %1023 = vmatmul.mubr.bf16.gmra.mrb[0].mxu0 %v988
    %v1024 = vpop.f32.mrb[0].mxu0
    %v1025 = vadd.f32 %v948, %v1024
    %v1026 = vpop.f32.mrb[0].mxu0
    %v1027 = vpop.f32.mrb[0].mxu0
    %v1028 = vadd.f32 %v948, %v1027
    %v1029 = vpop.f32.mrb[0].mxu0
    %1030 = vdwg.mxu0
    %1031 = vst [vmem:[#allocation8] sm:$0xff] %v1025
    %1032 = vst [vmem:[#allocation8 + $0x8] sm:$0xff] %v1028
    // Predicated region
    $region26: #{trigkan_forward.1} parent=1 // pred_check
      _
    $region27: #{trigkan_forward.1} parent=1 // pred_check_branch
      %1034 = sbr.rel (0) target = $region29
    $region28: #{trigkan_forward.1} parent=1 // pred_region
      %s1036 = ssub.s32 256, 256
      %1037 = vsyncadd [#allocation5], %s1036
      %s1038 = sshll.u32 [#allocation8], 4
      %s1039 = int_to_ptr.vmem [resolvable:$true] %s1038
      %1044 = dma.vmem_to_hbm [thread:$0]  %s1039, 256, %s3, [#allocation5], 128, 128, 8
    $region29: #{trigkan_forward.1} parent=1 // pred_fallthru
      _
    // Predicated region
    $region30: #{trigkan_forward.1} parent=1 // pred_check
      _
    $region31: #{trigkan_forward.1} parent=1 // pred_check_branch
      %1046 = sbr.rel (0) target = $region33
    $region32: #{trigkan_forward.1} parent=1 // pred_region
      %1047 = dma.done [#allocation5], 256
    $region33: #{trigkan_forward.1} parent=1 // pred_fallthru
      _
    %1048 = vsyncpa [#allocation4], 1
    %1049 = vsyncpa [#allocation7], 1
    %1050 = vsyncpa [#allocation5], 1

</llo_original>
